<compile_context>
chip_gen: v5e
topology: v5e:2x2
jax: 0.10.0
libtpu: 0.0.40
codegen_flags: <defaults>
</compile_context>

<pallas_src>
import functools

import jax
import jax.numpy as jnp
from jax.experimental import pallas as pl
from jax.experimental.pallas import tpu as pltpu


def _rope_kernel(ids_ref, omega_ref, expand_ref, out_ref):
    # ids_ref:    (1, TN, A)   f32 positions for this (batch, seq) tile
    # omega_ref:  (A,  D2)     omega_ref[a, d] = omega_d if freq d belongs to
    #                          axis a else 0 (masked per-axis frequency table)
    # expand_ref: (2, D2, D4)  0/+-1 expansion matrices: [0] scatters cos_d to
    #                          lanes 4d and 4d+3, [1] scatters -sin_d / +sin_d
    #                          to lanes 4d+1 / 4d+2
    # out_ref:    (1, TN, D4)  interleaved [cos, -sin, sin, cos] per frequency
    ids = ids_ref[0]                           # (TN, A)
    n_axes = ids.shape[1]

    # Angle at D2 width (one angle per frequency).  The per-axis gather is a
    # short chain of broadcast-FMAs (VPU + a few XLU broadcasts); kept off the
    # MXU so positions stay exact f32, and at D2 width this is well below the
    # EUP / store bound.
    ang = ids[:, 0:1] * omega_ref[0:1, :]      # (TN, D2)
    for a in range(1, n_axes):
        ang = ang + ids[:, a:a + 1] * omega_ref[a:a + 1, :]

    # Transcendentals at D2 width: 4x fewer EUP pushes than the D4-wide form.
    c = jnp.cos(ang)                           # (TN, D2)
    s = jnp.sin(ang)                           # (TN, D2)

    # D2 -> D4 interleave on the otherwise-idle MXU; the 0/+-1 matmuls perform
    # the cross-lane replication for free and keep the epilogue off the VPU.
    out = (jnp.dot(c, expand_ref[0], preferred_element_type=jnp.float32)
           + jnp.dot(s, expand_ref[1], preferred_element_type=jnp.float32))
    out_ref[0] = out.astype(out_ref.dtype)


def _build_tables(axes_dim, theta):
    """Returns (omega_tab (A, D2), expand (2, D2, 4*D2)) constant tables."""
    n_axes = len(axes_dim)
    halves = [d // 2 for d in axes_dim]
    d2 = sum(halves)

    omega = jnp.concatenate([
        1.0 / (theta ** (jnp.arange(0, d, 2, dtype=jnp.float32) / d))
        for d in axes_dim])                                          # (D2,)
    axis_id = jnp.concatenate([
        jnp.full((h,), a, dtype=jnp.int32) for a, h in enumerate(halves)])
    sel = (jnp.arange(n_axes, dtype=jnp.int32)[:, None] == axis_id[None, :])
    omega_tab = sel.astype(jnp.float32) * omega[None, :]             # (A, D2)

    lane = jnp.arange(4 * d2, dtype=jnp.int32)
    freq, phase = lane // 4, lane % 4
    match = jnp.arange(d2, dtype=jnp.int32)[:, None] == freq[None, :]  # (D2, D4)
    e_cos = jnp.where(match & ((phase == 0) | (phase == 3))[None, :], 1.0, 0.0)
    e_sin = jnp.where(match & (phase == 1)[None, :], -1.0,
                      jnp.where(match & (phase == 2)[None, :], 1.0, 0.0))
    expand = jnp.stack([e_cos, e_sin], axis=0).astype(jnp.float32)   # (2, D2, D4)
    return omega_tab, expand


@functools.partial(jax.jit,
                   static_argnames=("axes_dim", "theta", "tile_n", "out_dtype"))
def embed_nd(ids, axes_dim, theta, tile_n=2048, out_dtype=jnp.float32):
    """ids: (B, N, n_axes) -> (B, 1, N, sum(axes_dim)//2, 2, 2)."""
    B, N, A = ids.shape
    assert A == len(axes_dim)
    D2 = sum(d // 2 for d in axes_dim)
    D4 = 4 * D2
    omega_tab, expand = _build_tables(axes_dim, theta)

    # Sequence tile: multiple of 8 rows.  At tn=2048 the double-buffered
    # (ids + out) tiles are a few MiB -- far under v7x's 64 MiB VMEM / 32 MiB
    # scoped default -- while giving long store bursts per grid step.
    if N <= tile_n:
        tn = N
    else:
        tn = max(8, (tile_n // 8) * 8)
    # v7x Megacore: guarantee >= 2 total grid steps so both TensorCores get
    # work; shrink the tile rather than running a 1-step grid.
    if B * pl.cdiv(N, tn) < 2 and N >= 16:
        tn = ((N + 1) // 2 + 7) // 8 * 8

    grid = (B, pl.cdiv(N, tn))

    out = pl.pallas_call(
        _rope_kernel,
        out_shape=jax.ShapeDtypeStruct((B, N, D4), out_dtype),
        grid_spec=pltpu.PrefetchScalarGridSpec(
            num_scalar_prefetch=0,
            grid=grid,
            in_specs=[
                # (1, tn, A) lane-pads A=3 -> 128 in VMEM; absolute size is
                # small (<=1 MiB per buffer at tn=2048) so we accept it.
                pl.BlockSpec((1, tn, A), lambda b, n: (b, n, 0)),
                pl.BlockSpec((A, D2), lambda b, n: (0, 0)),
                pl.BlockSpec((2, D2, D4), lambda b, n: (0, 0, 0)),
            ],
            # Lane-dense fused output; D4 multiple of 128 (e.g. flux
            # (16,56,56) -> 256) gives fully unmasked stores.
            out_specs=pl.BlockSpec((1, tn, D4), lambda b, n: (b, n, 0)),
        ),
        compiler_params=pltpu.CompilerParams(
            dimension_semantics=("parallel", "parallel")),
    )(ids.astype(jnp.float32), omega_tab, expand)

    # Free reshape: interleaved [cos, -sin, sin, cos] -> (..., D2, 2, 2).
    return out.reshape(B, N, D2, 2, 2)[:, None]


def _reference_embed_nd(ids, axes_dim, theta):
    """Pure-JAX reference mirroring the PyTorch EmbedND.forward."""
    def rope(pos, dim, th):
        scale = jnp.arange(0, dim, 2, dtype=jnp.float32) / dim
        omega = 1.0 / (th ** scale)
        out = jnp.einsum("...n,d->...nd", pos, omega)
        out = jnp.stack([jnp.cos(out), -jnp.sin(out),
                         jnp.sin(out), jnp.cos(out)], axis=-1)
        return out.reshape(*out.shape[:-1], 2, 2).astype(jnp.float32)

    n_axes = ids.shape[-1]
    emb = jnp.concatenate(
        [rope(ids[..., i], axes_dim[i], theta) for i in range(n_axes)], axis=-3)
    return emb[:, None]


if __name__ == "__main__":
    # Small EmbedND config: dim=32, theta=10000, axes_dim=[8, 12, 12]
    axes_dim = (8, 12, 12)
    theta = 10000
    B, N = 2, 40   # N not a multiple of the tile -> exercises the padded tail

    key = jax.random.PRNGKey(0)
    ids = jax.random.randint(key, (B, N, len(axes_dim)), 0, 64).astype(jnp.float32)

    # tile_n=16 forces a multi-step grid (2 x 3, last seq tile OOB-padded) even
    # at this tiny demo size; production call sites keep the 2048 default.
    out = embed_nd(ids, axes_dim, theta, tile_n=16)
    out = jax.block_until_ready(out)

    ref = _reference_embed_nd(ids, axes_dim, theta)
    assert out.shape == (B, 1, N, sum(axes_dim) // 2, 2, 2), out.shape
    err = float(jnp.max(jnp.abs(out - ref)))
    # Exact-f32 path gives ~1e-6; the bound also tolerates a reduced-precision
    # MXU pass of the +-1 expansion matmul (<= 2^-9 on values in [-1, 1]) while
    # still catching any structural error (those are O(1)).
    assert err < 3e-3, err

    print("KERNEL_OK")
</pallas_src>

<mosaic_0001>
module attributes {stable_mosaic.version = 11 : i64} {
  func.func @_rope_kernel(%arg0: i32, %arg1: i32, %arg2: memref<1x16x3xf32, #tpu.memory_space<vmem>>, %arg3: memref<3x16xf32, #tpu.memory_space<vmem>>, %arg4: memref<2x16x64xf32, #tpu.memory_space<vmem>>, %arg5: memref<1x16x64xf32, #tpu.memory_space<vmem>>) attributes {dimension_semantics = [#tpu.dimension_semantics<parallel>, #tpu.dimension_semantics<parallel>], iteration_bounds = array<i64: 2, 3>, scalar_prefetch = 0 : i64, scratch_operands = 0 : i64, tpu.core_type = #tpu.core_type<tc>, window_params = [{transform_indices = @transform_0, window_bounds = array<i64: 1, 16, 3>}, {pipeline_mode = #tpu.pipeline_mode<synchronous>, transform_indices = @transform_1, window_bounds = array<i64: 3, 16>}, {pipeline_mode = #tpu.pipeline_mode<synchronous>, transform_indices = @transform_2, window_bounds = array<i64: 2, 16, 64>}, {transform_indices = @transform_3, window_bounds = array<i64: 1, 16, 64>}]} {
    %c0 = arith.constant 0 : index
    %c0_0 = arith.constant 0 : index
    %c0_1 = arith.constant 0 : index
    %0 = vector.load %arg2[%c0, %c0_0, %c0_1] : memref<1x16x3xf32, #tpu.memory_space<vmem>>, vector<1x16x3xf32>
    %1 = vector.shape_cast %0 : vector<1x16x3xf32> to vector<16x3xf32>
    %2 = vector.extract_strided_slice %1 {offsets = [0, 0], sizes = [16, 1], strides = [1, 1]} : vector<16x3xf32> to vector<16x1xf32>
    %c0_2 = arith.constant 0 : index
    %c0_3 = arith.constant 0 : index
    %3 = vector.load %arg3[%c0_2, %c0_3] : memref<3x16xf32, #tpu.memory_space<vmem>>, vector<1x16xf32>
    %4 = vector.broadcast %2 : vector<16x1xf32> to vector<16x16xf32>
    %5 = vector.broadcast %3 : vector<1x16xf32> to vector<16x16xf32>
    %6 = arith.mulf %4, %5 : vector<16x16xf32>
    %7 = vector.extract_strided_slice %1 {offsets = [0, 1], sizes = [16, 1], strides = [1, 1]} : vector<16x3xf32> to vector<16x1xf32>
    %c1 = arith.constant 1 : index
    %c0_4 = arith.constant 0 : index
    %8 = vector.load %arg3[%c1, %c0_4] : memref<3x16xf32, #tpu.memory_space<vmem>>, vector<1x16xf32>
    %9 = vector.broadcast %7 : vector<16x1xf32> to vector<16x16xf32>
    %10 = vector.broadcast %8 : vector<1x16xf32> to vector<16x16xf32>
    %11 = arith.mulf %9, %10 : vector<16x16xf32>
    %12 = arith.addf %6, %11 : vector<16x16xf32>
    %13 = vector.extract_strided_slice %1 {offsets = [0, 2], sizes = [16, 1], strides = [1, 1]} : vector<16x3xf32> to vector<16x1xf32>
    %c2 = arith.constant 2 : index
    %c0_5 = arith.constant 0 : index
    %14 = vector.load %arg3[%c2, %c0_5] : memref<3x16xf32, #tpu.memory_space<vmem>>, vector<1x16xf32>
    %15 = vector.broadcast %13 : vector<16x1xf32> to vector<16x16xf32>
    %16 = vector.broadcast %14 : vector<1x16xf32> to vector<16x16xf32>
    %17 = arith.mulf %15, %16 : vector<16x16xf32>
    %18 = arith.addf %12, %17 : vector<16x16xf32>
    %19 = math.cos %18 : vector<16x16xf32>
    %20 = math.sin %18 : vector<16x16xf32>
    %c0_6 = arith.constant 0 : index
    %c0_7 = arith.constant 0 : index
    %c0_8 = arith.constant 0 : index
    %21 = vector.load %arg4[%c0_6, %c0_7, %c0_8] : memref<2x16x64xf32, #tpu.memory_space<vmem>>, vector<1x16x64xf32>
    %22 = vector.shape_cast %21 : vector<1x16x64xf32> to vector<16x64xf32>
    %cst = arith.constant dense<0.000000e+00> : vector<16x64xf32>
    %23 = tpu.matmul %19, %22, %cst {dimension_numbers = #tpu.dot_dimension_numbers<[1], [0], [0], [1], [0, 0, 1, 1], [], []>} : vector<16x16xf32>, vector<16x64xf32>, vector<16x64xf32> -> vector<16x64xf32>
    %c1_9 = arith.constant 1 : index
    %c0_10 = arith.constant 0 : index
    %c0_11 = arith.constant 0 : index
    %24 = vector.load %arg4[%c1_9, %c0_10, %c0_11] : memref<2x16x64xf32, #tpu.memory_space<vmem>>, vector<1x16x64xf32>
    %25 = vector.shape_cast %24 : vector<1x16x64xf32> to vector<16x64xf32>
    %cst_12 = arith.constant dense<0.000000e+00> : vector<16x64xf32>
    %26 = tpu.matmul %20, %25, %cst_12 {dimension_numbers = #tpu.dot_dimension_numbers<[1], [0], [0], [1], [0, 0, 1, 1], [], []>} : vector<16x16xf32>, vector<16x64xf32>, vector<16x64xf32> -> vector<16x64xf32>
    %27 = arith.addf %23, %26 : vector<16x64xf32>
    %c0_13 = arith.constant 0 : index
    %c0_14 = arith.constant 0 : index
    %c0_15 = arith.constant 0 : index
    %28 = vector.load %arg5[%c0_13, %c0_14, %c0_15] : memref<1x16x64xf32, #tpu.memory_space<vmem>>, vector<1x16x64xf32>
    %29 = vector.shape_cast %28 : vector<1x16x64xf32> to vector<16x64xf32>
    %30 = vector.shape_cast %27 : vector<16x64xf32> to vector<1x16x64xf32>
    tpu.vector_store %arg5[%c0_13, %c0_14, %c0_15], %30 {strides = array<i32>} : memref<1x16x64xf32, #tpu.memory_space<vmem>>, vector<1x16x64xf32>,
    return
  }
  func.func @transform_0(%arg0: i32, %arg1: i32) -> (i32, i32, i32) {
    %c0_i32 = arith.constant 0 : i32
    %c0_i32_0 = arith.constant 0 : i32
    return %arg0, %arg1, %c0_i32 : i32, i32, i32
  }
  func.func @transform_1(%arg0: i32, %arg1: i32) -> (i32, i32) {
    %c0_i32 = arith.constant 0 : i32
    %c0_i32_0 = arith.constant 0 : i32
    %c0_i32_1 = arith.constant 0 : i32
    return %c0_i32, %c0_i32_0 : i32, i32
  }
  func.func @transform_2(%arg0: i32, %arg1: i32) -> (i32, i32, i32) {
    %c0_i32 = arith.constant 0 : i32
    %c0_i32_0 = arith.constant 0 : i32
    %c0_i32_1 = arith.constant 0 : i32
    %c0_i32_2 = arith.constant 0 : i32
    return %c0_i32, %c0_i32_0, %c0_i32_1 : i32, i32, i32
  }
  func.func @transform_3(%arg0: i32, %arg1: i32) -> (i32, i32, i32) {
    %c0_i32 = arith.constant 0 : i32
    %c0_i32_0 = arith.constant 0 : i32
    return %arg0, %arg1, %c0_i32 : i32, i32, i32
  }
}

</mosaic_0001>

<llo_original>
// kernel: embed_nd.1
$region0: #{embed_nd.1}
  #allocation0 [shape = 'u32[]', space=smem, size = 0x4, offset = 0x4, fixed_abs, tag = 'smem constant byte address 0x4 - core index']
  #allocation1 [shape = 'u32[72,128]{1,0:T(1,128)}', space=vmem, size = 0x9000, scoped, tag = 'internal scratch']
  %s0 = inlined_call_operand.vmem [shape: f32[2,40,3], index: 0, kind: input, shape index: {}]
  %s1 = inlined_call_operand.vmem [shape: f32[3,16], index: 1, kind: input, shape index: {}]
  %s2 = inlined_call_operand.vmem [shape: f32[2,16,64], index: 2, kind: input, shape index: {}]
  %s3 = inlined_call_operand.vmem [shape: f32[2,40,64], index: 3, kind: output, shape index: {}]
  %s4 = sld [smem:[#allocation0]]
  $region93: #{embed_nd.1} parent=0
    _
  %s6 = ssub.s32 1, %s4
  %s7 = scalar_select 0, %s6, %s4
  $region1: #{embed_nd.1} parent=0
    #allocation2 [shape = 'u8[16384]{0}', space=vmem, size = 0x4000, scoped, tag = 'output window, operand 0']
    loop: start=0, step=1, limit=8
    $region2: #{embed_nd.1} parent=1 // loop_pre_header
      _
    $region3: #{embed_nd.1} parent=1 // loop_header
      %s9 = sphi 0, %s13
      %p10 = scmp.ge.s32.totalorder %s9, 8
      %s16 = sphi 0, %s28
      %s17 = sphi 0, %s24
      %s18 = sphi 0, %s16
      %s19 = sphi 0, %s17
      %s20 = sphi 0, %s18
      %s21 = sphi 0, %s19
      %s33 = sphi 0, %s35
      %s36 = sphi 0, %s33
      %s37 = sphi 0, %s36
      %s53 = sphi 0, %s37
      %s57 = sphi 0, %s57
      %s59 = sphi 0, %s57
      %s60 = sphi 0, %s59
      %s74 = sphi 0, %s60
      %s78 = sphi 0, %s78
      %s80 = sphi 0, %s78
      %s81 = sphi 0, %s80
      %s95 = sphi 0, %s81
      %s103 = sphi 0, %s105
      %s106 = sphi 0, %s103
      %s107 = sphi 0, %s106
      %s123 = sphi 0, %s107
    $region4: #{embed_nd.1} parent=1 // loop_header_branch
      %12 = sbr.rel (%p10) target = $region8
    $region5: #{embed_nd.1} parent=1 // loop_body
      %s14 = ssub.s32 %s9, 1
      %s15 = ssub.s32 %s9, 2
      %s22 = sadd.s32 1, %s17
      %p23 = scmp.ge.s32.totalorder %s22, 3
      %s24 = scalar_select %p23, 0, %s22
      %s25 = sadd.s32 1, %s16
      %s26 = scalar_select %p23, %s25, %s16
      %p27 = scmp.ge.s32.totalorder %s26, 2
      %s28 = scalar_select %p27, 0, %s26
      %s29 = ssub.s32 %s16, %s28
      %s30 = ssub.s32 %s17, %s24
      %s31 = sor.u32 %s29, %s30
      %p32 = scmp.eq.s32.totalorder %s31, 0
      %s34 = sadd.s32 %s33, 1
      %s35 = scalar_select %p32, %s33, %s34
      %p38 = pneg %p32
      %p39 = scmp.eq.s32.totalorder %s9, 5
      %p40 = por %p38, %p39
      %p41 = scmp.ne.s32.totalorder %s33, %s36
      %p42 = scmp.eq.s32.totalorder %s9, 0
      %p43 = por %p41, %p42
      %p44 = scmp.ne.s32.totalorder %s33, %s36
      %p45 = scmp.eq.s32.totalorder %s14, 5
      %p46 = por %p44, %p45
      %p47 = scmp.ne.s32.totalorder %s36, %s37
      %p48 = scmp.eq.s32.totalorder %s14, 0
      %p49 = por %p47, %p48
      %p50 = scmp.ne.s32.totalorder %s36, %s37
      %p51 = scmp.eq.s32.totalorder %s15, 5
      %p52 = por %p50, %p51
      %p54 = scmp.ne.s32.totalorder %s37, %s53
      %p55 = scmp.eq.s32.totalorder %s15, 0
      %p56 = por %p54, %p55
      %s58 = sadd.s32 %s57, 1
      %p61 = scmp.eq.s32.totalorder %s9, 5
      %p62 = scmp.ne.s32.totalorder %s57, %s59
      %p63 = scmp.eq.s32.totalorder %s9, 0
      %p64 = por %p62, %p63
      %p65 = scmp.ne.s32.totalorder %s57, %s59
      %p66 = scmp.eq.s32.totalorder %s14, 5
      %p67 = por %p65, %p66
      %p68 = scmp.ne.s32.totalorder %s59, %s60
      %p69 = scmp.eq.s32.totalorder %s14, 0
      %p70 = por %p68, %p69
      %p71 = scmp.ne.s32.totalorder %s59, %s60
      %p72 = scmp.eq.s32.totalorder %s15, 5
      %p73 = por %p71, %p72
      %p75 = scmp.ne.s32.totalorder %s60, %s74
      %p76 = scmp.eq.s32.totalorder %s15, 0
      %p77 = por %p75, %p76
      %s79 = sadd.s32 %s78, 1
      %p82 = scmp.eq.s32.totalorder %s9, 5
      %p83 = scmp.ne.s32.totalorder %s78, %s80
      %p84 = scmp.eq.s32.totalorder %s9, 0
      %p85 = por %p83, %p84
      %p86 = scmp.ne.s32.totalorder %s78, %s80
      %p87 = scmp.eq.s32.totalorder %s14, 5
      %p88 = por %p86, %p87
      %p89 = scmp.ne.s32.totalorder %s80, %s81
      %p90 = scmp.eq.s32.totalorder %s14, 0
      %p91 = por %p89, %p90
      %p92 = scmp.ne.s32.totalorder %s80, %s81
      %p93 = scmp.eq.s32.totalorder %s15, 5
      %p94 = por %p92, %p93
      %p96 = scmp.ne.s32.totalorder %s81, %s95
      %p97 = scmp.eq.s32.totalorder %s15, 0
      %p98 = por %p96, %p97
      %s99 = ssub.s32 %s16, %s28
      %s100 = ssub.s32 %s17, %s24
      %s101 = sor.u32 %s99, %s100
      %p102 = scmp.eq.s32.totalorder %s101, 0
      %s104 = sadd.s32 %s103, 1
      %s105 = scalar_select %p102, %s103, %s104
      %p108 = pneg %p102
      %p109 = scmp.eq.s32.totalorder %s9, 5
      %p110 = por %p108, %p109
      %p111 = scmp.ne.s32.totalorder %s103, %s106
      %p112 = scmp.eq.s32.totalorder %s9, 0
      %p113 = por %p111, %p112
      %p114 = scmp.ne.s32.totalorder %s103, %s106
      %p115 = scmp.eq.s32.totalorder %s14, 5
      %p116 = por %p114, %p115
      %p117 = scmp.ne.s32.totalorder %s106, %s107
      %p118 = scmp.eq.s32.totalorder %s14, 0
      %p119 = por %p117, %p118
      %p120 = scmp.ne.s32.totalorder %s106, %s107
      %p121 = scmp.eq.s32.totalorder %s15, 5
      %p122 = por %p120, %p121
      %p124 = scmp.ne.s32.totalorder %s107, %s123
      %p125 = scmp.eq.s32.totalorder %s15, 0
      %p126 = por %p124, %p125
      %p127 = scmp.le.s32.totalorder 1, %s9
      %p128 = scmp.lt.s32.totalorder %s9, 7
      %p129 = pnand %p127, %p128
      %p130 = pneg %p129
      // Predicated region
      $region9: #{embed_nd.1} parent=5 // pred_check
        _
      $region10: #{embed_nd.1} parent=5 // pred_check_branch
        %132 = sbr.rel (%p129) target = $region12
      $region11: #{embed_nd.1} parent=5 // pred_region
        %s133 = ssub.s32 %s9, 1
        // Predicated region
        $region13: #{embed_nd.1} parent=11 // pred_check
          %p134 = pneg %p70
        $region14: #{embed_nd.1} parent=11 // pred_check_branch
          %136 = sbr.rel (%p134) target = $region16
        $region15: #{embed_nd.1} parent=11 // pred_region
          _
        $region16: #{embed_nd.1} parent=11 // pred_fallthru
          _
        // Predicated region
        $region17: #{embed_nd.1} parent=11 // pred_check
          %p137 = pneg %p91
        $region18: #{embed_nd.1} parent=11 // pred_check_branch
          %139 = sbr.rel (%p137) target = $region20
        $region19: #{embed_nd.1} parent=11 // pred_region
          _
        $region20: #{embed_nd.1} parent=11 // pred_fallthru
          _
      $region12: #{embed_nd.1} parent=5 // pred_fallthru
        _
      %p140 = scmp.lt.s32.totalorder %s9, 6
      // Predicated region
      $region21: #{embed_nd.1} parent=5 // pred_check
        %p141 = pneg %p140
      $region22: #{embed_nd.1} parent=5 // pred_check_branch
        %143 = sbr.rel (%p141) target = $region24
      $region23: #{embed_nd.1} parent=5 // pred_region
        // Predicated region
        $region25: #{embed_nd.1} parent=23 // pred_check
          %p144 = pneg %p43
        $region26: #{embed_nd.1} parent=23 // pred_check_branch
          %146 = sbr.rel (%p144) target = $region28
        $region27: #{embed_nd.1} parent=23 // pred_region
          %s147 = smul.u32 2, %s17
          %s148 = ssub.s32 5, %s147
          %p149 = scmp.lt.s32.totalorder %s148, 2
          %s150 = scalar_select %p149, %s148, 2
          %s151 = smul.u32 8, %s150
          %p152 = scmp.lt.s32.totalorder %s16, 1
          %s153 = scalar_select %p152, %s16, 1
          %p154 = scmp.lt.s32.totalorder %s147, 4
          %s155 = scalar_select %p154, %s147, 4
          %s156 = smul.addr %s153, 5
          %s157 = sadd.s32 %s155, %s156
          %s158 = smul.addr %s157, 8
          %s159 = scalar_lea.vmem %s0, %s158
          %s160 = smul.u32 2, %s17
          %s161 = ssub.s32 5, %s160
          %p162 = scmp.lt.s32.totalorder %s161, 2
          %s163 = scalar_select %p162, %s161, 2
          %s164 = smul.u32 8, %s163
        $region28: #{embed_nd.1} parent=23 // pred_fallthru
          _
      $region24: #{embed_nd.1} parent=5 // pred_fallthru
        _
      %p165 = scmp.le.s32.totalorder 1, %s9
      %p166 = scmp.lt.s32.totalorder %s9, 7
      %p167 = pnand %p165, %p166
      %p168 = pneg %p167
      // Predicated region
      $region29: #{embed_nd.1} parent=5 // pred_check
        _
      $region30: #{embed_nd.1} parent=5 // pred_check_branch
        %170 = sbr.rel (%p167) target = $region32
      $region31: #{embed_nd.1} parent=5 // pred_region
        %s171 = ssub.s32 %s9, 1
        %s172 = smul.u32 2, %s19
        %s173 = ssub.s32 5, %s172
        %p174 = scmp.lt.s32.totalorder %s173, 2
        %s175 = scalar_select %p174, %s173, 2
        %s176 = smul.u32 8, %s175
        %p177 = scmp.lt.s32.totalorder %s18, 1
        %s178 = scalar_select %p177, %s18, 1
        %p179 = scmp.lt.s32.totalorder %s172, 4
        %s180 = scalar_select %p179, %s172, 4
        %s181 = smul.addr %s178, 5
        %s182 = sadd.s32 %s180, %s181
        %s183 = smul.addr %s182, 8
        %s184 = scalar_lea.vmem %s0, %s183
        %p185 = pneg %p49
        %p186 = pneg %p46
        %p187 = pneg %p70
        %p188 = pneg %p67
        %p189 = pneg %p91
        %p190 = pneg %p88
        %p191 = pneg %p119
        %p192 = pneg %p116
        %s193 = sand.u32 %s106, 1
        %s194 = sand.u32 %s106, 1
        %s195 = smul.addr %s194, 16
        %s196 = scalar_lea.vmem [#allocation2], %s195
        %s197 = smul.u32 2, %s19
        %s198 = ssub.s32 5, %s197
        %p199 = scmp.lt.s32.totalorder %s198, 2
        %s200 = scalar_select %p199, %s198, 2
        %s201 = smul.u32 8, %s200
        %p202 = scmp.lt.s32.totalorder %s18, 1
        %s203 = scalar_select %p202, %s18, 1
        %p204 = scmp.lt.s32.totalorder %s197, 4
        %s205 = scalar_select %p204, %s197, 4
        %s206 = smul.addr %s203, 5
        %s207 = sadd.s32 %s205, %s206
        %s208 = smul.addr %s207, 8
        %s209 = scalar_lea.vmem %s0, %s208
        %s210 = smul.u32 2, %s19
        %s211 = ssub.s32 5, %s210
        %p212 = scmp.lt.s32.totalorder %s211, 2
        %s213 = scalar_select %p212, %s211, 2
        %s214 = smul.u32 8, %s213
        %s215 = smul.u32 2, %s19
        %s216 = ssub.s32 5, %s215
        %p217 = scmp.lt.s32.totalorder %s216, 2
        %s218 = scalar_select %p217, %s216, 2
        %s219 = smul.u32 8, %s218
        %v220 = vld [vmem:[%s209] sm:$0xff]
        %v221 = vld [vmem:[%s209 + $0x8] sm:$0xff]
        %v222 = vld [vmem:[%s1] sm:$0x1]
        %224 = vset.pattern.permute.xlu0 0
        %225 = vperm.xlu0 %224, %v220
        %v226 = vpop.permute.xlu0 %225
        %229 = vset.pattern.permute.xlu0 0
        %230 = vperm.xlu0 %229, %v221
        %v231 = vpop.permute.xlu0 %230
        %v233 = vperm.slane %v222, 0
        %v234 = vmul.f32 %v226, %v233
        %v235 = vmul.f32 %v231, %v233
        %v236 = vld [vmem:[%s1 + $0x1] sm:$0x1]
        %237 = vset.pattern.permute.xlu0 1
        %238 = vperm.xlu0 %237, %v220
        %v239 = vpop.permute.xlu0 %238
        %241 = vset.pattern.permute.xlu0 1
        %242 = vperm.xlu0 %241, %v221
        %v243 = vpop.permute.xlu0 %242
        %v245 = vperm.slane %v236, 0
        %v246 = vmul.f32 %v239, %v245
        %v247 = vmul.f32 %v243, %v245
        %v248 = vadd.f32 %v234, %v246
        %v249 = vadd.f32 %v235, %v247
        %v250 = vld [vmem:[%s1 + $0x2] sm:$0x1]
        %251 = vset.pattern.permute.xlu0 2
        %252 = vperm.xlu0 %251, %v220
        %v253 = vpop.permute.xlu0 %252
        %255 = vset.pattern.permute.xlu0 2
        %256 = vperm.xlu0 %255, %v221
        %v257 = vpop.permute.xlu0 %256
        %v259 = vperm.slane %v250, 0
        %v260 = vmul.f32 %v253, %v259
        %v261 = vmul.f32 %v257, %v259
        %v262 = vadd.f32 %v248, %v260
        %v263 = vadd.f32 %v249, %v261
        %v264 = vand.u32 2147483647, %v262
        %vm265 = vcmp.le.f32.partialorder %v264, 0.7853982
        %vm266 = vcmp.lt.s32.totalorder %v262, 0
        %v267 = vand.u32 %v262, 2139095040
        %v268 = vshrl.u32 %v267, 23
        %v269 = vsub.s32 %v268, 127
        %v270 = vand.u32 2147483647, %v262
        %v271 = vand.u32 %v270, 8388607
        %v272 = vor.u32 %v271, 8388608
        %v273 = vsub.s32 0, %v272
        %v274 = vadd.s32 %v269, 1
        %vm275 = vcmp.gt.s32.totalorder %v274, 0
        %v276 = vsel %vm275, %v274, 0
        %v277 = vshrl.u32 %v276, 5
        %v278 = vand.u32 %v276, 31
        %v279 = vsub.s32 32, %v278
        %v280 = vshrl.u32 683565275, %v279
        %v281 = vshll.u32 683565275, %v278
        %v282 = vshrl.u32 2475754826, %v279
        %v283 = vor.u32 %v281, %v282
        %v284 = vshll.u32 2475754826, %v278
        %v285 = vshrl.u32 2131351028, %v279
        %v286 = vor.u32 %v284, %v285
        %v287 = vshll.u32 2131351028, %v278
        %v288 = vshrl.u32 2102212464, %v279
        %v289 = vor.u32 %v287, %v288
        %v290 = vshll.u32 2102212464, %v278
        %v291 = vshrl.u32 920167782, %v279
        %v292 = vor.u32 %v290, %v291
        %v293 = vshll.u32 920167782, %v278
        %v294 = vshrl.u32 1326507024, %v279
        %v295 = vor.u32 %v293, %v294
        %vm296 = vcmp.lt.s32.totalorder %v277, 1
        %vm297 = vcmp.lt.s32.totalorder %v277, 2
        %vm298 = vcmp.lt.s32.totalorder %v277, 3
        %vm299 = vcmp.lt.s32.totalorder %v277, 4
        %v300 = vsel %vm296, %v280, %v283
        %v301 = vsel %vm299, %v289, 2102212464
        %v302 = vsel %vm298, %v286, %v301
        %v303 = vsel %vm297, %v300, %v302
        %v304 = vsel %vm296, %v283, %v286
        %v305 = vsel %vm299, %v292, 920167782
        %v306 = vsel %vm298, %v289, %v305
        %v307 = vsel %vm297, %v304, %v306
        %v308 = vsel %vm296, %v286, %v289
        %v309 = vsel %vm299, %v295, 1326507024
        %v310 = vsel %vm298, %v292, %v309
        %v311 = vsel %vm297, %v308, %v310
        %v312 = vshll.u32 %v272, 8
        %v313 = vand.u32 %v312, 65535
        %v314 = vshrl.u32 %v312, 16
        %v315 = vand.u32 %v311, 65535
        %v316 = vshrl.u32 %v311, 16
        %v317 = vmul.u32 %v313, %v315
        %v318 = vmul.u32 %v313, %v316
        %v319 = vmul.u32 %v314, %v315
        %v320 = vmul.u32 %v314, %v316
        %v321 = vshll.u32 %v318, 16
        %v322 = vshrl.u32 %v318, 16
        %v323 = vshll.u32 %v319, 16
        %v324 = vshrl.u32 %v319, 16
        %vm325 = vc.u32 %v317, %v321
        %v326 = vsel %vm325, 1, 0
        %v327 = vadd.s32 %v317, %v321
        %v328 = vadd.s32 %v320, %v326
        %vm329 = vc.u32 %v327, %v323
        %v330 = vsel %vm329, 1, 0
        %v331 = vadd.s32 %v327, %v323
        %v332 = vadd.s32 %v328, %v330
        %v333 = vadd.s32 %v332, %v322
        %v334 = vadd.s32 %v333, %v324
        %v335 = vand.u32 %v312, 65535
        %v336 = vshrl.u32 %v312, 16
        %v337 = vand.u32 %v307, 65535
        %v338 = vshrl.u32 %v307, 16
        %v339 = vmul.u32 %v335, %v337
        %v340 = vmul.u32 %v335, %v338
        %v341 = vmul.u32 %v336, %v337
        %v342 = vmul.u32 %v336, %v338
        %v343 = vshll.u32 %v340, 16
        %v344 = vshrl.u32 %v340, 16
        %v345 = vshll.u32 %v341, 16
        %v346 = vshrl.u32 %v341, 16
        %vm347 = vc.u32 %v339, %v343
        %v348 = vsel %vm347, 1, 0
        %v349 = vadd.s32 %v339, %v343
        %v350 = vadd.s32 %v342, %v348
        %vm351 = vc.u32 %v349, %v345
        %v352 = vsel %vm351, 1, 0
        %v353 = vadd.s32 %v349, %v345
        %v354 = vadd.s32 %v350, %v352
        %v355 = vadd.s32 %v354, %v344
        %v356 = vadd.s32 %v355, %v346
        %v357 = vmul.u32 %v312, %v303
        %v358 = vadd.s32 %v334, %v353
        %vm359 = vc.u32 %v334, %v353
        %v360 = vadd.s32 %v356, 1
        %v361 = vsel %vm359, %v360, %v356
        %v362 = vadd.s32 %v357, %v361
        %v363 = vadd.s32 %v362, 536870912
        %v364 = vshrl.u32 %v363, 30
        %v365 = vshll.u32 %v364, 30
        %v366 = vsub.s32 %v362, %v365
        %vm367 = vcmp.lt.s32.totalorder %v366, 0
        %v368 = vsub.s32 0, %v366
        %v369 = vsel %vm367, %v368, %v366
        %v370 = vclz %v369
        %v371 = vsub.s32 %v370, 2
        %vm372 = vcmp.gt.s32.totalorder 0, %v371
        %v373 = vsel %vm372, 0, %v371
        %v374 = vsub.s32 32, %v373
        %v375 = vshll.u32 %v366, %v373
        %v376 = vshrl.u32 %v358, %v374
        %v377 = vor.u32 %v375, %v376
        %v378 = vsub.s32 4294967266, %v373
        %v379 = vadd.s32 %v378, 127
        %v380 = vshll.u32 %v379, 23
        %v381 = vor.u32 4788187, %v380
        %v382 = vand.u32 2147483647, %v381
        %v384 = vcvt.s32.f32 %v377
        %v385 = vmul.f32 %v384, %v382
        %v386 = vxor.u32 %v385, 2147483648
        %v387 = vsel %vm266, %v386, %v385
        %v388 = vsub.s32 4, %v364
        %v389 = vsel %vm266, %v388, %v364
        %v390 = vsel %vm265, %v262, %v387
        %v391 = vsel %vm265, 0, %v389
        %v392 = vmul.f32 %v390, %v390
        %v393 = vmul.f32 %v392, -0.001358992
        %v394 = vadd.f32 %v393, 0.041655596
        %v395 = vmul.f32 %v392, %v394
        %v396 = vadd.f32 %v395, -0.4999988
        %v397 = vmul.f32 %v392, %v396
        %v398 = vadd.f32 1.0, %v397
        %v399 = vmul.f32 %v390, %v390
        %v400 = vmul.f32 %v399, -0.00019511016
        %v401 = vadd.f32 %v400, 0.008332121
        %v402 = vmul.f32 %v399, %v401
        %v403 = vadd.f32 %v402, -0.16666654
        %v404 = vmul.f32 %v399, %v403
        %v405 = vadd.f32 %v404, 1.0
        %v406 = vmul.f32 %v405, %v390
        %vm407 = vweird.f32 %v262
        %v408 = vand.u32 %v391, 3
        %vm409 = vcmp.lt.s32.totalorder %v408, 2
        %vm410 = vcmp.eq.s32.totalorder %v408, 0
        %v411 = vxor.u32 %v406, 2147483648
        %v412 = vsel %vm410, %v398, %v411
        %vm413 = vcmp.eq.s32.totalorder %v408, 2
        %v414 = vxor.u32 %v398, 2147483648
        %v415 = vsel %vm413, %v414, %v406
        %v416 = vsel %vm409, %v412, %v415
        %v417 = vsel %vm407, nan, %v416
        %v418 = vand.u32 2147483647, %v263
        %vm419 = vcmp.le.f32.partialorder %v418, 0.7853982
        %vm420 = vcmp.lt.s32.totalorder %v263, 0
        %v421 = vand.u32 %v263, 2139095040
        %v422 = vshrl.u32 %v421, 23
        %v423 = vsub.s32 %v422, 127
        %v424 = vand.u32 2147483647, %v263
        %v425 = vand.u32 %v424, 8388607
        %v426 = vor.u32 %v425, 8388608
        %v427 = vsub.s32 0, %v426
        %v428 = vadd.s32 %v423, 1
        %vm429 = vcmp.gt.s32.totalorder %v428, 0
        %v430 = vsel %vm429, %v428, 0
        %v431 = vshrl.u32 %v430, 5
        %v432 = vand.u32 %v430, 31
        %v433 = vsub.s32 32, %v432
        %v434 = vshrl.u32 683565275, %v433
        %v435 = vshll.u32 683565275, %v432
        %v436 = vshrl.u32 2475754826, %v433
        %v437 = vor.u32 %v435, %v436
        %v438 = vshll.u32 2475754826, %v432
        %v439 = vshrl.u32 2131351028, %v433
        %v440 = vor.u32 %v438, %v439
        %v441 = vshll.u32 2131351028, %v432
        %v442 = vshrl.u32 2102212464, %v433
        %v443 = vor.u32 %v441, %v442
        %v444 = vshll.u32 2102212464, %v432
        %v445 = vshrl.u32 920167782, %v433
        %v446 = vor.u32 %v444, %v445
        %v447 = vshll.u32 920167782, %v432
        %v448 = vshrl.u32 1326507024, %v433
        %v449 = vor.u32 %v447, %v448
        %vm450 = vcmp.lt.s32.totalorder %v431, 1
        %vm451 = vcmp.lt.s32.totalorder %v431, 2
        %vm452 = vcmp.lt.s32.totalorder %v431, 3
        %vm453 = vcmp.lt.s32.totalorder %v431, 4
        %v454 = vsel %vm450, %v434, %v437
        %v455 = vsel %vm453, %v443, 2102212464
        %v456 = vsel %vm452, %v440, %v455
        %v457 = vsel %vm451, %v454, %v456
        %v458 = vsel %vm450, %v437, %v440
        %v459 = vsel %vm453, %v446, 920167782
        %v460 = vsel %vm452, %v443, %v459
        %v461 = vsel %vm451, %v458, %v460
        %v462 = vsel %vm450, %v440, %v443
        %v463 = vsel %vm453, %v449, 1326507024
        %v464 = vsel %vm452, %v446, %v463
        %v465 = vsel %vm451, %v462, %v464
        %v466 = vshll.u32 %v426, 8
        %v467 = vand.u32 %v466, 65535
        %v468 = vshrl.u32 %v466, 16
        %v469 = vand.u32 %v465, 65535
        %v470 = vshrl.u32 %v465, 16
        %v471 = vmul.u32 %v467, %v469
        %v472 = vmul.u32 %v467, %v470
        %v473 = vmul.u32 %v468, %v469
        %v474 = vmul.u32 %v468, %v470
        %v475 = vshll.u32 %v472, 16
        %v476 = vshrl.u32 %v472, 16
        %v477 = vshll.u32 %v473, 16
        %v478 = vshrl.u32 %v473, 16
        %vm479 = vc.u32 %v471, %v475
        %v480 = vsel %vm479, 1, 0
        %v481 = vadd.s32 %v471, %v475
        %v482 = vadd.s32 %v474, %v480
        %vm483 = vc.u32 %v481, %v477
        %v484 = vsel %vm483, 1, 0
        %v485 = vadd.s32 %v481, %v477
        %v486 = vadd.s32 %v482, %v484
        %v487 = vadd.s32 %v486, %v476
        %v488 = vadd.s32 %v487, %v478
        %v489 = vand.u32 %v466, 65535
        %v490 = vshrl.u32 %v466, 16
        %v491 = vand.u32 %v461, 65535
        %v492 = vshrl.u32 %v461, 16
        %v493 = vmul.u32 %v489, %v491
        %v494 = vmul.u32 %v489, %v492
        %v495 = vmul.u32 %v490, %v491
        %v496 = vmul.u32 %v490, %v492
        %v497 = vshll.u32 %v494, 16
        %v498 = vshrl.u32 %v494, 16
        %v499 = vshll.u32 %v495, 16
        %v500 = vshrl.u32 %v495, 16
        %vm501 = vc.u32 %v493, %v497
        %v502 = vsel %vm501, 1, 0
        %v503 = vadd.s32 %v493, %v497
        %v504 = vadd.s32 %v496, %v502
        %vm505 = vc.u32 %v503, %v499
        %v506 = vsel %vm505, 1, 0
        %v507 = vadd.s32 %v503, %v499
        %v508 = vadd.s32 %v504, %v506
        %v509 = vadd.s32 %v508, %v498
        %v510 = vadd.s32 %v509, %v500
        %v511 = vmul.u32 %v466, %v457
        %v512 = vadd.s32 %v488, %v507
        %vm513 = vc.u32 %v488, %v507
        %v514 = vadd.s32 %v510, 1
        %v515 = vsel %vm513, %v514, %v510
        %v516 = vadd.s32 %v511, %v515
        %v517 = vadd.s32 %v516, 536870912
        %v518 = vshrl.u32 %v517, 30
        %v519 = vshll.u32 %v518, 30
        %v520 = vsub.s32 %v516, %v519
        %vm521 = vcmp.lt.s32.totalorder %v520, 0
        %v522 = vsub.s32 0, %v520
        %v523 = vsel %vm521, %v522, %v520
        %v524 = vclz %v523
        %v525 = vsub.s32 %v524, 2
        %vm526 = vcmp.gt.s32.totalorder 0, %v525
        %v527 = vsel %vm526, 0, %v525
        %v528 = vsub.s32 32, %v527
        %v529 = vshll.u32 %v520, %v527
        %v530 = vshrl.u32 %v512, %v528
        %v531 = vor.u32 %v529, %v530
        %v532 = vsub.s32 4294967266, %v527
        %v533 = vadd.s32 %v532, 127
        %v534 = vshll.u32 %v533, 23
        %v535 = vor.u32 4788187, %v534
        %v536 = vand.u32 2147483647, %v535
        %v538 = vcvt.s32.f32 %v531
        %v539 = vmul.f32 %v538, %v536
        %v540 = vxor.u32 %v539, 2147483648
        %v541 = vsel %vm420, %v540, %v539
        %v542 = vsub.s32 4, %v518
        %v543 = vsel %vm420, %v542, %v518
        %v544 = vsel %vm419, %v263, %v541
        %v545 = vsel %vm419, 0, %v543
        %v546 = vmul.f32 %v544, %v544
        %v547 = vmul.f32 %v546, -0.001358992
        %v548 = vadd.f32 %v547, 0.041655596
        %v549 = vmul.f32 %v546, %v548
        %v550 = vadd.f32 %v549, -0.4999988
        %v551 = vmul.f32 %v546, %v550
        %v552 = vadd.f32 1.0, %v551
        %v553 = vmul.f32 %v544, %v544
        %v554 = vmul.f32 %v553, -0.00019511016
        %v555 = vadd.f32 %v554, 0.008332121
        %v556 = vmul.f32 %v553, %v555
        %v557 = vadd.f32 %v556, -0.16666654
        %v558 = vmul.f32 %v553, %v557
        %v559 = vadd.f32 %v558, 1.0
        %v560 = vmul.f32 %v559, %v544
        %vm561 = vweird.f32 %v263
        %v562 = vand.u32 %v545, 3
        %vm563 = vcmp.lt.s32.totalorder %v562, 2
        %vm564 = vcmp.eq.s32.totalorder %v562, 0
        %v565 = vxor.u32 %v560, 2147483648
        %v566 = vsel %vm564, %v552, %v565
        %vm567 = vcmp.eq.s32.totalorder %v562, 2
        %v568 = vxor.u32 %v552, 2147483648
        %v569 = vsel %vm567, %v568, %v560
        %v570 = vsel %vm563, %v566, %v569
        %v571 = vsel %vm561, nan, %v570
        %v572 = vand.u32 2147483647, %v262
        %vm573 = vcmp.le.f32.partialorder %v572, 0.7853982
        %vm574 = vcmp.lt.s32.totalorder %v262, 0
        %v575 = vand.u32 %v262, 2139095040
        %v576 = vshrl.u32 %v575, 23
        %v577 = vsub.s32 %v576, 127
        %v578 = vand.u32 2147483647, %v262
        %v579 = vand.u32 %v578, 8388607
        %v580 = vor.u32 %v579, 8388608
        %v581 = vsub.s32 0, %v580
        %v582 = vadd.s32 %v577, 1
        %vm583 = vcmp.gt.s32.totalorder %v582, 0
        %v584 = vsel %vm583, %v582, 0
        %v585 = vshrl.u32 %v584, 5
        %v586 = vand.u32 %v584, 31
        %v587 = vsub.s32 32, %v586
        %v588 = vshrl.u32 683565275, %v587
        %v589 = vshll.u32 683565275, %v586
        %v590 = vshrl.u32 2475754826, %v587
        %v591 = vor.u32 %v589, %v590
        %v592 = vshll.u32 2475754826, %v586
        %v593 = vshrl.u32 2131351028, %v587
        %v594 = vor.u32 %v592, %v593
        %v595 = vshll.u32 2131351028, %v586
        %v596 = vshrl.u32 2102212464, %v587
        %v597 = vor.u32 %v595, %v596
        %v598 = vshll.u32 2102212464, %v586
        %v599 = vshrl.u32 920167782, %v587
        %v600 = vor.u32 %v598, %v599
        %v601 = vshll.u32 920167782, %v586
        %v602 = vshrl.u32 1326507024, %v587
        %v603 = vor.u32 %v601, %v602
        %vm604 = vcmp.lt.s32.totalorder %v585, 1
        %vm605 = vcmp.lt.s32.totalorder %v585, 2
        %vm606 = vcmp.lt.s32.totalorder %v585, 3
        %vm607 = vcmp.lt.s32.totalorder %v585, 4
        %v608 = vsel %vm604, %v588, %v591
        %v609 = vsel %vm607, %v597, 2102212464
        %v610 = vsel %vm606, %v594, %v609
        %v611 = vsel %vm605, %v608, %v610
        %v612 = vsel %vm604, %v591, %v594
        %v613 = vsel %vm607, %v600, 920167782
        %v614 = vsel %vm606, %v597, %v613
        %v615 = vsel %vm605, %v612, %v614
        %v616 = vsel %vm604, %v594, %v597
        %v617 = vsel %vm607, %v603, 1326507024
        %v618 = vsel %vm606, %v600, %v617
        %v619 = vsel %vm605, %v616, %v618
        %v620 = vshll.u32 %v580, 8
        %v621 = vand.u32 %v620, 65535
        %v622 = vshrl.u32 %v620, 16
        %v623 = vand.u32 %v619, 65535
        %v624 = vshrl.u32 %v619, 16
        %v625 = vmul.u32 %v621, %v623
        %v626 = vmul.u32 %v621, %v624
        %v627 = vmul.u32 %v622, %v623
        %v628 = vmul.u32 %v622, %v624
        %v629 = vshll.u32 %v626, 16
        %v630 = vshrl.u32 %v626, 16
        %v631 = vshll.u32 %v627, 16
        %v632 = vshrl.u32 %v627, 16
        %vm633 = vc.u32 %v625, %v629
        %v634 = vsel %vm633, 1, 0
        %v635 = vadd.s32 %v625, %v629
        %v636 = vadd.s32 %v628, %v634
        %vm637 = vc.u32 %v635, %v631
        %v638 = vsel %vm637, 1, 0
        %v639 = vadd.s32 %v635, %v631
        %v640 = vadd.s32 %v636, %v638
        %v641 = vadd.s32 %v640, %v630
        %v642 = vadd.s32 %v641, %v632
        %v643 = vand.u32 %v620, 65535
        %v644 = vshrl.u32 %v620, 16
        %v645 = vand.u32 %v615, 65535
        %v646 = vshrl.u32 %v615, 16
        %v647 = vmul.u32 %v643, %v645
        %v648 = vmul.u32 %v643, %v646
        %v649 = vmul.u32 %v644, %v645
        %v650 = vmul.u32 %v644, %v646
        %v651 = vshll.u32 %v648, 16
        %v652 = vshrl.u32 %v648, 16
        %v653 = vshll.u32 %v649, 16
        %v654 = vshrl.u32 %v649, 16
        %vm655 = vc.u32 %v647, %v651
        %v656 = vsel %vm655, 1, 0
        %v657 = vadd.s32 %v647, %v651
        %v658 = vadd.s32 %v650, %v656
        %vm659 = vc.u32 %v657, %v653
        %v660 = vsel %vm659, 1, 0
        %v661 = vadd.s32 %v657, %v653
        %v662 = vadd.s32 %v658, %v660
        %v663 = vadd.s32 %v662, %v652
        %v664 = vadd.s32 %v663, %v654
        %v665 = vmul.u32 %v620, %v611
        %v666 = vadd.s32 %v642, %v661
        %vm667 = vc.u32 %v642, %v661
        %v668 = vadd.s32 %v664, 1
        %v669 = vsel %vm667, %v668, %v664
        %v670 = vadd.s32 %v665, %v669
        %v671 = vadd.s32 %v670, 536870912
        %v672 = vshrl.u32 %v671, 30
        %v673 = vshll.u32 %v672, 30
        %v674 = vsub.s32 %v670, %v673
        %vm675 = vcmp.lt.s32.totalorder %v674, 0
        %v676 = vsub.s32 0, %v674
        %v677 = vsel %vm675, %v676, %v674
        %v678 = vclz %v677
        %v679 = vsub.s32 %v678, 2
        %vm680 = vcmp.gt.s32.totalorder 0, %v679
        %v681 = vsel %vm680, 0, %v679
        %v682 = vsub.s32 32, %v681
        %v683 = vshll.u32 %v674, %v681
        %v684 = vshrl.u32 %v666, %v682
        %v685 = vor.u32 %v683, %v684
        %v686 = vsub.s32 4294967266, %v681
        %v687 = vadd.s32 %v686, 127
        %v688 = vshll.u32 %v687, 23
        %v689 = vor.u32 4788187, %v688
        %v690 = vand.u32 2147483647, %v689
        %v692 = vcvt.s32.f32 %v685
        %v693 = vmul.f32 %v692, %v690
        %v694 = vxor.u32 %v693, 2147483648
        %v695 = vsel %vm574, %v694, %v693
        %v696 = vsub.s32 4, %v672
        %v697 = vsel %vm574, %v696, %v672
        %v698 = vsel %vm573, %v262, %v695
        %v699 = vsel %vm573, 0, %v697
        %v700 = vmul.f32 %v698, %v698
        %v701 = vmul.f32 %v700, -0.001358992
        %v702 = vadd.f32 %v701, 0.041655596
        %v703 = vmul.f32 %v700, %v702
        %v704 = vadd.f32 %v703, -0.4999988
        %v705 = vmul.f32 %v700, %v704
        %v706 = vadd.f32 1.0, %v705
        %v707 = vmul.f32 %v698, %v698
        %v708 = vmul.f32 %v707, -0.00019511016
        %v709 = vadd.f32 %v708, 0.008332121
        %v710 = vmul.f32 %v707, %v709
        %v711 = vadd.f32 %v710, -0.16666654
        %v712 = vmul.f32 %v707, %v711
        %v713 = vadd.f32 %v712, 1.0
        %v714 = vmul.f32 %v713, %v698
        %vm715 = vweird.f32 %v262
        %v716 = vadd.s32 %v699, 3
        %v717 = vand.u32 %v716, 3
        %vm718 = vcmp.lt.s32.totalorder %v717, 2
        %vm719 = vcmp.eq.s32.totalorder %v717, 0
        %v720 = vxor.u32 %v714, 2147483648
        %v721 = vsel %vm719, %v706, %v720
        %vm722 = vcmp.eq.s32.totalorder %v717, 2
        %v723 = vxor.u32 %v706, 2147483648
        %v724 = vsel %vm722, %v723, %v714
        %v725 = vsel %vm718, %v721, %v724
        %v726 = vsel %vm715, nan, %v725
        %v727 = vand.u32 2147483647, %v263
        %vm728 = vcmp.le.f32.partialorder %v727, 0.7853982
        %vm729 = vcmp.lt.s32.totalorder %v263, 0
        %v730 = vand.u32 %v263, 2139095040
        %v731 = vshrl.u32 %v730, 23
        %v732 = vsub.s32 %v731, 127
        %v733 = vand.u32 2147483647, %v263
        %v734 = vand.u32 %v733, 8388607
        %v735 = vor.u32 %v734, 8388608
        %v736 = vsub.s32 0, %v735
        %v737 = vadd.s32 %v732, 1
        %vm738 = vcmp.gt.s32.totalorder %v737, 0
        %v739 = vsel %vm738, %v737, 0
        %v740 = vshrl.u32 %v739, 5
        %v741 = vand.u32 %v739, 31
        %v742 = vsub.s32 32, %v741
        %v743 = vshrl.u32 683565275, %v742
        %v744 = vshll.u32 683565275, %v741
        %v745 = vshrl.u32 2475754826, %v742
        %v746 = vor.u32 %v744, %v745
        %v747 = vshll.u32 2475754826, %v741
        %v748 = vshrl.u32 2131351028, %v742
        %v749 = vor.u32 %v747, %v748
        %v750 = vshll.u32 2131351028, %v741
        %v751 = vshrl.u32 2102212464, %v742
        %v752 = vor.u32 %v750, %v751
        %v753 = vshll.u32 2102212464, %v741
        %v754 = vshrl.u32 920167782, %v742
        %v755 = vor.u32 %v753, %v754
        %v756 = vshll.u32 920167782, %v741
        %v757 = vshrl.u32 1326507024, %v742
        %v758 = vor.u32 %v756, %v757
        %vm759 = vcmp.lt.s32.totalorder %v740, 1
        %vm760 = vcmp.lt.s32.totalorder %v740, 2
        %vm761 = vcmp.lt.s32.totalorder %v740, 3
        %vm762 = vcmp.lt.s32.totalorder %v740, 4
        %v763 = vsel %vm759, %v743, %v746
        %v764 = vsel %vm762, %v752, 2102212464
        %v765 = vsel %vm761, %v749, %v764
        %v766 = vsel %vm760, %v763, %v765
        %v767 = vsel %vm759, %v746, %v749
        %v768 = vsel %vm762, %v755, 920167782
        %v769 = vsel %vm761, %v752, %v768
        %v770 = vsel %vm760, %v767, %v769
        %v771 = vsel %vm759, %v749, %v752
        %v772 = vsel %vm762, %v758, 1326507024
        %v773 = vsel %vm761, %v755, %v772
        %v774 = vsel %vm760, %v771, %v773
        %v775 = vshll.u32 %v735, 8
        %v776 = vand.u32 %v775, 65535
        %v777 = vshrl.u32 %v775, 16
        %v778 = vand.u32 %v774, 65535
        %v779 = vshrl.u32 %v774, 16
        %v780 = vmul.u32 %v776, %v778
        %v781 = vmul.u32 %v776, %v779
        %v782 = vmul.u32 %v777, %v778
        %v783 = vmul.u32 %v777, %v779
        %v784 = vshll.u32 %v781, 16
        %v785 = vshrl.u32 %v781, 16
        %v786 = vshll.u32 %v782, 16
        %v787 = vshrl.u32 %v782, 16
        %vm788 = vc.u32 %v780, %v784
        %v789 = vsel %vm788, 1, 0
        %v790 = vadd.s32 %v780, %v784
        %v791 = vadd.s32 %v783, %v789
        %vm792 = vc.u32 %v790, %v786
        %v793 = vsel %vm792, 1, 0
        %v794 = vadd.s32 %v790, %v786
        %v795 = vadd.s32 %v791, %v793
        %v796 = vadd.s32 %v795, %v785
        %v797 = vadd.s32 %v796, %v787
        %v798 = vand.u32 %v775, 65535
        %v799 = vshrl.u32 %v775, 16
        %v800 = vand.u32 %v770, 65535
        %v801 = vshrl.u32 %v770, 16
        %v802 = vmul.u32 %v798, %v800
        %v803 = vmul.u32 %v798, %v801
        %v804 = vmul.u32 %v799, %v800
        %v805 = vmul.u32 %v799, %v801
        %v806 = vshll.u32 %v803, 16
        %v807 = vshrl.u32 %v803, 16
        %v808 = vshll.u32 %v804, 16
        %v809 = vshrl.u32 %v804, 16
        %vm810 = vc.u32 %v802, %v806
        %v811 = vsel %vm810, 1, 0
        %v812 = vadd.s32 %v802, %v806
        %v813 = vadd.s32 %v805, %v811
        %vm814 = vc.u32 %v812, %v808
        %v815 = vsel %vm814, 1, 0
        %v816 = vadd.s32 %v812, %v808
        %v817 = vadd.s32 %v813, %v815
        %v818 = vadd.s32 %v817, %v807
        %v819 = vadd.s32 %v818, %v809
        %v820 = vmul.u32 %v775, %v766
        %v821 = vadd.s32 %v797, %v816
        %vm822 = vc.u32 %v797, %v816
        %v823 = vadd.s32 %v819, 1
        %v824 = vsel %vm822, %v823, %v819
        %v825 = vadd.s32 %v820, %v824
        %v826 = vadd.s32 %v825, 536870912
        %v827 = vshrl.u32 %v826, 30
        %v828 = vshll.u32 %v827, 30
        %v829 = vsub.s32 %v825, %v828
        %vm830 = vcmp.lt.s32.totalorder %v829, 0
        %v831 = vsub.s32 0, %v829
        %v832 = vsel %vm830, %v831, %v829
        %v833 = vclz %v832
        %v834 = vsub.s32 %v833, 2
        %vm835 = vcmp.gt.s32.totalorder 0, %v834
        %v836 = vsel %vm835, 0, %v834
        %v837 = vsub.s32 32, %v836
        %v838 = vshll.u32 %v829, %v836
        %v839 = vshrl.u32 %v821, %v837
        %v840 = vor.u32 %v838, %v839
        %v841 = vsub.s32 4294967266, %v836
        %v842 = vadd.s32 %v841, 127
        %v843 = vshll.u32 %v842, 23
        %v844 = vor.u32 4788187, %v843
        %v845 = vand.u32 2147483647, %v844
        %v847 = vcvt.s32.f32 %v840
        %v848 = vmul.f32 %v847, %v845
        %v849 = vxor.u32 %v848, 2147483648
        %v850 = vsel %vm729, %v849, %v848
        %v851 = vsub.s32 4, %v827
        %v852 = vsel %vm729, %v851, %v827
        %v853 = vsel %vm728, %v263, %v850
        %v854 = vsel %vm728, 0, %v852
        %v855 = vmul.f32 %v853, %v853
        %v856 = vmul.f32 %v855, -0.001358992
        %v857 = vadd.f32 %v856, 0.041655596
        %v858 = vmul.f32 %v855, %v857
        %v859 = vadd.f32 %v858, -0.4999988
        %v860 = vmul.f32 %v855, %v859
        %v861 = vadd.f32 1.0, %v860
        %v862 = vmul.f32 %v853, %v853
        %v863 = vmul.f32 %v862, -0.00019511016
        %v864 = vadd.f32 %v863, 0.008332121
        %v865 = vmul.f32 %v862, %v864
        %v866 = vadd.f32 %v865, -0.16666654
        %v867 = vmul.f32 %v862, %v866
        %v868 = vadd.f32 %v867, 1.0
        %v869 = vmul.f32 %v868, %v853
        %vm870 = vweird.f32 %v263
        %v871 = vadd.s32 %v854, 3
        %v872 = vand.u32 %v871, 3
        %vm873 = vcmp.lt.s32.totalorder %v872, 2
        %vm874 = vcmp.eq.s32.totalorder %v872, 0
        %v875 = vxor.u32 %v869, 2147483648
        %v876 = vsel %vm874, %v861, %v875
        %vm877 = vcmp.eq.s32.totalorder %v872, 2
        %v878 = vxor.u32 %v861, 2147483648
        %v879 = vsel %vm877, %v878, %v869
        %v880 = vsel %vm873, %v876, %v879
        %v881 = vsel %vm870, nan, %v880
        %v882 = vld [vmem:[%s2] sm:$0xff]
        %v883 = vld [vmem:[%s2 + $0x8] sm:$0xff]
        %s884 = scalar_lea.vmem %s2, 16
        %v885 = vld [vmem:[%s884] sm:$0xff]
        %v886 = vld [vmem:[%s884 + $0x8] sm:$0xff]
        %vm887 = vcmask 130048
        %v889 = vsel %vm887, %v726, 0
        %v892 = vsel %vm887, %v881, 0
        %894 = vmatpush.msra.mxu0 0.0
        %895 = vmatpush.msra.mxu0 0.0
        %896 = vmatpush.msra.mxu0 0.0
        %897 = vmatpush.msra.mxu0 0.0
        %898 = vmatpush.msra.mxu0 0.0
        %899 = vmatpush.msra.mxu0 0.0
        %900 = vmatpush.msra.mxu0 0.0
        %901 = vmatpush.msra.mxu0 0.0
        %902 = vmatpush.msra.mxu0 0.0
        %903 = vmatpush.msra.mxu0 0.0
        %904 = vmatpush.msra.mxu0 0.0
        %905 = vmatpush.msra.mxu0 0.0
        %906 = vmatpush.msra.mxu0 0.0
        %907 = vmatpush.msra.mxu0 0.0
        %908 = vmatpush.msra.mxu0 %v886
        %909 = vmatpush.msra.mxu0 %v885
        %910 = vmatmul.f32.gmra.mxu0 %v889
        %v911 = vpop.f32.mrf.mxu0
        %v912 = vadd.f32 0.0, %v911
        %913 = vmatmul.f32.gmra.mxu0 %v892
        %v914 = vpop.f32.mrf.mxu0
        %v915 = vadd.f32 0.0, %v914
        %916 = vdwg.mxu0
        %v918 = vsel %vm887, %v417, 0
        %v921 = vsel %vm887, %v571, 0
        %923 = vmatpush.msra.mxu0 0.0
        %924 = vmatpush.msra.mxu0 0.0
        %925 = vmatpush.msra.mxu0 0.0
        %926 = vmatpush.msra.mxu0 0.0
        %927 = vmatpush.msra.mxu0 0.0
        %928 = vmatpush.msra.mxu0 0.0
        %929 = vmatpush.msra.mxu0 0.0
        %930 = vmatpush.msra.mxu0 0.0
        %931 = vmatpush.msra.mxu0 0.0
        %932 = vmatpush.msra.mxu0 0.0
        %933 = vmatpush.msra.mxu0 0.0
        %934 = vmatpush.msra.mxu0 0.0
        %935 = vmatpush.msra.mxu0 0.0
        %936 = vmatpush.msra.mxu0 0.0
        %937 = vmatpush.msra.mxu0 %v883
        %938 = vmatpush.msra.mxu0 %v882
        %939 = vmatmul.f32.gmra.mxu0 %v918
        %v940 = vpop.f32.mrf.mxu0
        %v941 = vadd.f32 %v912, %v940
        %942 = vmatmul.f32.gmra.mxu0 %v921
        %v943 = vpop.f32.mrf.mxu0
        %v944 = vadd.f32 %v915, %v943
        %945 = vdwg.mxu0
        %vm946 = vcmask 523264
        %947 = vst.msk [vmem:[%s196] sm:$0xff] %vm946, %v941
        %948 = vst.msk [vmem:[%s196 + $0x8] sm:$0xff] %vm946, %v944
        %s949 = sand.u32 %s106, 1
        %s950 = sand.u32 %s106, 1
        %s951 = smul.addr %s950, 16
        %s952 = scalar_lea.vmem [#allocation2], %s951
        // Predicated region
        $region33: #{embed_nd.1} parent=31 // pred_check
          %p953 = pneg %p116
        $region34: #{embed_nd.1} parent=31 // pred_check_branch
          %955 = sbr.rel (%p953) target = $region36
        $region35: #{embed_nd.1} parent=31 // pred_region
          %s956 = smul.u32 2, %s19
          %s957 = ssub.s32 5, %s956
          %p958 = scmp.lt.s32.totalorder %s957, 2
          %s959 = scalar_select %p958, %s957, 2
          %s960 = smul.u32 8, %s959
          %p961 = scmp.ne.s32.totalorder 0, %s960
          %s962 = smul.addr %s18, 5
          %s963 = sadd.s32 %s956, %s962
          %s964 = smul.addr %s963, 8
          %s965 = scalar_lea.vmem %s3, %s964
          // Predicated region
          $region37: #{embed_nd.1} parent=35 // pred_check
            %p966 = pneg %p961
          $region38: #{embed_nd.1} parent=35 // pred_check_branch
            %968 = sbr.rel (%p966) target = $region40
          $region39: #{embed_nd.1} parent=35 // pred_region
            // Predicated region
            $region41: #{embed_nd.1} parent=39 // pred_check
              _
            $region42: #{embed_nd.1} parent=39 // pred_check_branch
              %970 = sbr.rel (0) target = $region44
            $region43: #{embed_nd.1} parent=39 // pred_region
              // Predicated region
              $region63: #{embed_nd.1} parent=43 // pred_check
                _
              $region64: #{embed_nd.1} parent=43 // pred_check_branch
                %1022 = sbr.rel (0) target = $region66
              $region65: #{embed_nd.1} parent=43 // pred_region
                %s1023 = sshrl.u32 %s959, 1
                // While loop
                $region67: #{embed_nd.1} parent=65 // loop_pre_header
                  _
                $region68: #{embed_nd.1} parent=65 // loop_header
                  %s1025 = sphi 0, %s1027
                  %p1026 = scmp.ge.s32.totalorder %s1025, %s1023
                  %s1030 = sphi 0, %s1039
                  %s1031 = sphi %s952, %s1042
                  %s1032 = sphi %s965, %s1043
                $region69: #{embed_nd.1} parent=65 // loop_header_branch
                  %1029 = sbr.rel (%p1026) target = $region73
                $region70: #{embed_nd.1} parent=65 // loop_body
                  %v1033 = vld [vmem:[%s1031] sm:$0xff]
                  %1034 = vst [vmem:[%s1032] sm:$0xff] %v1033
                  %v1035 = vld [vmem:[%s1031 + $0x8] sm:$0xff]
                  %1036 = vst [vmem:[%s1032 + $0x8] sm:$0xff] %v1035
                  %s1037 = sadd.s32 1, %s1030
                  %p1038 = scmp.ge.s32.totalorder %s1037, %s1023
                  %s1039 = scalar_select %p1038, 0, %s1037
                  %s1040 = smul.u32 %s1039, 16
                  %s1041 = smul.u32 %s1039, 16
                  %s1042 = scalar_lea.vmem %s952, %s1040 [#allocation2]
                  %s1043 = scalar_lea.vmem %s965, %s1041
                $region71: #{embed_nd.1} parent=65 // loop_footer
                  %s1027 = sadd.s32 %s1025, 1
                $region72: #{embed_nd.1} parent=65 // loop_footer_branch
                  %1024 = sbr.rel target = $region68
                $region73: #{embed_nd.1} parent=65 // loop_exit
                  _
                %s1044 = sshrl.u32 %s959, 1
                %s1045 = sand.u32 %s959, 1
                %s1046 = smul.u32 %s1044, 2
                %s1047 = smul.u32 8, %s1046
                %s1048 = scalar_lea.vmem %s952, %s1047 [#allocation2]
                %s1049 = smul.u32 8, %s1046
                %s1050 = scalar_lea.vmem %s965, %s1049
                // While loop
                $region74: #{embed_nd.1} parent=65 // loop_pre_header
                  _
                $region75: #{embed_nd.1} parent=65 // loop_header
                  %s1052 = sphi 0, %s1054
                  %p1053 = scmp.ge.s32.totalorder %s1052, %s1045
                  %s1057 = sphi 0, %s1064
                  %s1058 = sphi %s1048, %s1067
                  %s1059 = sphi %s1050, %s1068
                $region76: #{embed_nd.1} parent=65 // loop_header_branch
                  %1056 = sbr.rel (%p1053) target = $region80
                $region77: #{embed_nd.1} parent=65 // loop_body
                  %v1060 = vld [vmem:[%s1058] sm:$0xff]
                  %1061 = vst [vmem:[%s1059] sm:$0xff] %v1060
                  %s1062 = sadd.s32 1, %s1057
                  %p1063 = scmp.ge.s32.totalorder %s1062, %s1045
                  %s1064 = scalar_select %p1063, 0, %s1062
                  %s1065 = smul.u32 %s1064, 8
                  %s1066 = smul.u32 %s1064, 8
                  %s1067 = scalar_lea.vmem %s1048, %s1065 [#allocation2]
                  %s1068 = scalar_lea.vmem %s1050, %s1066
                $region78: #{embed_nd.1} parent=65 // loop_footer
                  %s1054 = sadd.s32 %s1052, 1
                $region79: #{embed_nd.1} parent=65 // loop_footer_branch
                  %1051 = sbr.rel target = $region75
                $region80: #{embed_nd.1} parent=65 // loop_exit
                  _
              $region66: #{embed_nd.1} parent=43 // pred_fallthru
                _
              // Predicated region
              $region81: #{embed_nd.1} parent=43 // pred_check
                _
              $region82: #{embed_nd.1} parent=43 // pred_check_branch
                %1070 = sbr.rel target = $region84
              $region83: #{embed_nd.1} parent=43 // pred_region
                _
              $region84: #{embed_nd.1} parent=43 // pred_fallthru
                _
            $region44: #{embed_nd.1} parent=39 // pred_fallthru
              _
            // Predicated region
            $region45: #{embed_nd.1} parent=39 // pred_check
              _
            $region46: #{embed_nd.1} parent=39 // pred_check_branch
              %972 = sbr.rel target = $region48
            $region47: #{embed_nd.1} parent=39 // pred_region
              %s974 = ssub.s32 256, 1
              %s975 = sshrl.u32 %s959, 1
              // While loop
              $region49: #{embed_nd.1} parent=47 // loop_pre_header
                _
              $region50: #{embed_nd.1} parent=47 // loop_header
                %s977 = sphi 0, %s979
                %p978 = scmp.ge.s32.totalorder %s977, %s975
                %s982 = sphi 0, %s991
                %s983 = sphi %s952, %s994
                %s984 = sphi %s965, %s995
              $region51: #{embed_nd.1} parent=47 // loop_header_branch
                %981 = sbr.rel (%p978) target = $region55
              $region52: #{embed_nd.1} parent=47 // loop_body
                %v985 = vld [vmem:[%s983] sm:%s974]
                %986 = vst [vmem:[%s984] sm:%s974] %v985
                %v987 = vld [vmem:[%s983 + $0x8] sm:%s974]
                %988 = vst [vmem:[%s984 + $0x8] sm:%s974] %v987
                %s989 = sadd.s32 1, %s982
                %p990 = scmp.ge.s32.totalorder %s989, %s975
                %s991 = scalar_select %p990, 0, %s989
                %s992 = smul.u32 %s991, 16
                %s993 = smul.u32 %s991, 16
                %s994 = scalar_lea.vmem %s952, %s992 [#allocation2]
                %s995 = scalar_lea.vmem %s965, %s993
              $region53: #{embed_nd.1} parent=47 // loop_footer
                %s979 = sadd.s32 %s977, 1
              $region54: #{embed_nd.1} parent=47 // loop_footer_branch
                %976 = sbr.rel target = $region50
              $region55: #{embed_nd.1} parent=47 // loop_exit
                _
              %s996 = sshrl.u32 %s959, 1
              %s997 = sand.u32 %s959, 1
              %s998 = smul.u32 %s996, 2
              %s999 = smul.u32 8, %s998
              %s1000 = scalar_lea.vmem %s952, %s999 [#allocation2]
              %s1001 = smul.u32 8, %s998
              %s1002 = scalar_lea.vmem %s965, %s1001
              // While loop
              $region56: #{embed_nd.1} parent=47 // loop_pre_header
                _
              $region57: #{embed_nd.1} parent=47 // loop_header
                %s1004 = sphi 0, %s1006
                %p1005 = scmp.ge.s32.totalorder %s1004, %s997
                %s1009 = sphi 0, %s1016
                %s1010 = sphi %s1000, %s1019
                %s1011 = sphi %s1002, %s1020
              $region58: #{embed_nd.1} parent=47 // loop_header_branch
                %1008 = sbr.rel (%p1005) target = $region62
              $region59: #{embed_nd.1} parent=47 // loop_body
                %v1012 = vld [vmem:[%s1010] sm:%s974]
                %1013 = vst [vmem:[%s1011] sm:%s974] %v1012
                %s1014 = sadd.s32 1, %s1009
                %p1015 = scmp.ge.s32.totalorder %s1014, %s997
                %s1016 = scalar_select %p1015, 0, %s1014
                %s1017 = smul.u32 %s1016, 8
                %s1018 = smul.u32 %s1016, 8
                %s1019 = scalar_lea.vmem %s1000, %s1017 [#allocation2]
                %s1020 = scalar_lea.vmem %s1002, %s1018
              $region60: #{embed_nd.1} parent=47 // loop_footer
                %s1006 = sadd.s32 %s1004, 1
              $region61: #{embed_nd.1} parent=47 // loop_footer_branch
                %1003 = sbr.rel target = $region57
              $region62: #{embed_nd.1} parent=47 // loop_exit
                _
            $region48: #{embed_nd.1} parent=39 // pred_fallthru
              _
          $region40: #{embed_nd.1} parent=35 // pred_fallthru
            _
          %1071 = vnop
        $region36: #{embed_nd.1} parent=31 // pred_fallthru
          _
      $region32: #{embed_nd.1} parent=5 // pred_fallthru
        _
      %p1072 = scmp.le.s32.totalorder 2, %s9
      // Predicated region
      $region85: #{embed_nd.1} parent=5 // pred_check
        %p1073 = pneg %p1072
      $region86: #{embed_nd.1} parent=5 // pred_check_branch
        %1075 = sbr.rel (%p1073) target = $region88
      $region87: #{embed_nd.1} parent=5 // pred_region
        %s1076 = ssub.s32 %s9, 2
        // Predicated region
        $region89: #{embed_nd.1} parent=87 // pred_check
          %p1077 = pneg %p122
        $region90: #{embed_nd.1} parent=87 // pred_check_branch
          %1079 = sbr.rel (%p1077) target = $region92
        $region91: #{embed_nd.1} parent=87 // pred_region
          %s1080 = sand.u32 %s107, 1
          %s1081 = sand.u32 %s107, 1
          %s1082 = smul.addr %s1081, 16
          %s1083 = scalar_lea.vmem [#allocation2], %s1082
        $region92: #{embed_nd.1} parent=87 // pred_fallthru
          _
      $region88: #{embed_nd.1} parent=5 // pred_fallthru
        _
    $region6: #{embed_nd.1} parent=1 // loop_footer
      %s13 = sadd.s32 1, %s9
    $region7: #{embed_nd.1} parent=1 // loop_footer_branch
      %8 = sbr.rel target = $region3
    $region8: #{embed_nd.1} parent=1 // loop_exit
      _

</llo_original>
